<compile_context>
chip_gen: v7x
topology: tpu7x:2x2x1
jax: 0.10.0
libtpu: 0.0.40
codegen_flags: <defaults>
</compile_context>

<pallas_src>
import jax
import jax.numpy as jnp
from jax.experimental import pallas as pl
from jax.experimental.pallas import tpu as pltpu


def _round_up(x: int, m: int) -> int:
    return ((x + m - 1) // m) * m


def _linear_kernel_acc(x_ref, w_ref, b_ref, o_ref, acc_ref):
    # x_ref: (tm, tk)  w_ref: (tk, tn)  b_ref: (1, tn)  o_ref: (tm, tn)
    # acc_ref: (tm, tn) f32, resident across the K ("arbitrary") grid axis.
    k = pl.program_id(2)

    @pl.when(k == 0)
    def _():
        acc_ref[...] = jnp.zeros_like(acc_ref)

    # MXU-natural (M,K) x (K,N) matmul, f32 accumulate. No in-kernel transpose.
    acc_ref[...] += jnp.dot(
        x_ref[...], w_ref[...], preferred_element_type=jnp.float32
    )

    @pl.when(k == pl.num_programs(2) - 1)
    def _():
        o_ref[...] = (acc_ref[...] + b_ref[...]).astype(o_ref.dtype)


def _linear_kernel_single_k(x_ref, w_ref, b_ref, o_ref):
    # Single K step: skip the accumulator scratch and init/finalize round trip.
    o_ref[...] = (
        jnp.dot(x_ref[...], w_ref[...], preferred_element_type=jnp.float32)
        + b_ref[...]
    ).astype(o_ref.dtype)


def prepare_linear_params(weights, bias, *, compute_dtype=None):
    """One-time weight prep (call at weight-load time, NOT per forward).

    weights: (size_out, size_in) PyTorch-style storage, bias: (size_out,).
    Returns:
      w_kn:     (Kp, size_out) = weights.T, zero-padded on K to a multiple of 128,
                optionally cast to compute_dtype (e.g. bfloat16 for v6e/v7x).
      bias_row: (1, size_out) float32.
    """
    N, K = weights.shape
    assert bias.shape == (N,)
    w_kn = weights.T  # (K, N) -- MXU-natural orientation, transposed exactly once
    if compute_dtype is not None:
        w_kn = w_kn.astype(compute_dtype)
    Kp = _round_up(K, 128)
    if Kp != K:
        w_kn = jnp.pad(w_kn, ((0, Kp - K), (0, 0)))  # zero K rows contribute 0
    bias_row = bias.reshape(1, N).astype(jnp.float32)
    return w_kn, bias_row


def linear_forward(x, w_kn, bias_row, *, tm=None, tn=None, tk=None,
                   compute_dtype=None):
    """y = x @ W^T + b, with W supplied pre-transposed/pre-padded by
    prepare_linear_params().  x: (M, K), w_kn: (Kp, N), bias_row: (1, N)."""
    M, K = x.shape
    Kp, N = w_kn.shape
    assert bias_row.shape == (1, N)
    assert Kp >= K and Kp % 128 == 0, "w_kn must come from prepare_linear_params()"

    out_dtype = x.dtype
    if compute_dtype is not None:
        assert w_kn.dtype == jnp.dtype(compute_dtype), (
            "pass the same compute_dtype to prepare_linear_params()")
        x = x.astype(compute_dtype)
    cbytes = jnp.dtype(x.dtype).itemsize
    obytes = jnp.dtype(out_dtype).itemsize

    # ---- Tile sizes: big tiles => fewer grid steps & less HBM re-streaming.
    sub = {4: 8, 2: 16, 1: 32}.get(cbytes, 8)        # sublane packing per dtype
    if tm is None:
        tm = min(512, _round_up(M, sub))             # larger tm => W streamed fewer times
    if tn is None:
        tn = min(1024, _round_up(N, 128))            # larger tn => x re-read fewer times
    if tk is None:
        for cand in (1024, 512, 256, 128):           # largest 128-mult divisor of Kp
            if Kp % cand == 0:
                tk = cand
                break
    assert Kp % tk == 0 and tn % 128 == 0 and tm % sub == 0

    # v7x has 2 TensorCores sharded over the "parallel" grid axes: avoid a
    # degenerate 1x1 parallel grid when the problem is big enough to split.
    if pl.cdiv(M, tm) * pl.cdiv(N, tn) < 2:
        if N > 128 and tn > 128:
            tn = max(128, _round_up(pl.cdiv(N, 2), 128))
        elif M > sub and tm > sub:
            tm = max(sub, _round_up(pl.cdiv(M, 2), sub))
    gm, gn, gk = pl.cdiv(M, tm), pl.cdiv(N, tn), Kp // tk
    grid = (gm, gn, gk)

    # Zero-pad x along K only. Ragged M/N edge blocks are handled by Pallas
    # (garbage read there never reaches a valid output element); ragged K would
    # corrupt the accumulator, so it must be zero.
    if Kp != K:
        x = jnp.pad(x, ((0, 0), (0, Kp - K)))

    # ---- BlockSpecs. Deeper buffering on the weight stream when K is long
    # (v5e is DMA-bound on the W stream); clean fallback on older JAX.
    w_index = lambda i, j, k: (k, j)
    w_buffers = 3 if gk >= 3 else 2
    if w_buffers > 2:
        try:
            w_spec = pl.BlockSpec((tk, tn), w_index,
                                  pipeline_mode=pl.Buffered(w_buffers))
        except TypeError:  # pipeline_mode not supported in this JAX version
            w_buffers = 2
            w_spec = pl.BlockSpec((tk, tn), w_index)
    else:
        w_spec = pl.BlockSpec((tk, tn), w_index)

    single_k = gk == 1
    kernel = _linear_kernel_single_k if single_k else _linear_kernel_acc
    scratch = [] if single_k else [pltpu.VMEM((tm, tn), jnp.float32)]

    # VMEM budget: double-buffered x/out, w_buffers-deep weights, f32 acc.
    vmem_est = (2 * tm * tk * cbytes + w_buffers * tk * tn * cbytes
                + 2 * tm * tn * obytes + 2 * tn * 4
                + (0 if single_k else tm * tn * 4))
    vmem_limit = int(min(56 * 1024 * 1024,                 # stay under v7x 64 MiB
                         max(32 * 1024 * 1024, vmem_est * 5 // 4)))

    return pl.pallas_call(
        kernel,
        out_shape=jax.ShapeDtypeStruct((M, N), out_dtype),
        grid=grid,
        in_specs=[
            pl.BlockSpec((tm, tk), lambda i, j, k: (i, k)),   # activations tile
            w_spec,                                           # pre-transposed weight tile
            pl.BlockSpec((1, tn), lambda i, j, k: (0, j)),    # bias tile
        ],
        out_specs=pl.BlockSpec((tm, tn), lambda i, j, k: (i, j)),
        scratch_shapes=scratch,
        compiler_params=pltpu.CompilerParams(
            dimension_semantics=("parallel", "parallel", "arbitrary"),
            vmem_limit_bytes=vmem_limit,
        ),
        cost_estimate=pl.CostEstimate(
            flops=2 * M * N * Kp,
            bytes_accessed=cbytes * (M * Kp + Kp * N) + obytes * M * N + 4 * N,
            transcendentals=0,
        ),
    )(x, w_kn, bias_row)


def my_linear_layer(x, weights, bias, *, compute_dtype=None, **tile_kwargs):
    """One-shot convenience. Prefer prepare_linear_params() + linear_forward()
    so the weight transpose/pad is paid once, not per call."""
    w_kn, bias_row = prepare_linear_params(weights, bias, compute_dtype=compute_dtype)
    return linear_forward(x, w_kn, bias_row, compute_dtype=compute_dtype,
                          **tile_kwargs)


if __name__ == "__main__":
    # Small shapes consistent with the module's forward: x (batch, size_in),
    # weights (size_out, size_in), bias (size_out,).
    batch, size_in, size_out = 8, 32, 16

    key = jax.random.PRNGKey(0)
    kx, kw, kb = jax.random.split(key, 3)

    x = jax.random.normal(kx, (batch, size_in), dtype=jnp.float32)
    weights = jax.random.normal(kw, (size_out, size_in), dtype=jnp.float32) * 0.1
    bias = jax.random.normal(kb, (size_out,), dtype=jnp.float32) * 0.1

    # One-time weight prep; the per-call path never touches the raw weights.
    w_kn, bias_row = prepare_linear_params(weights, bias)
    fwd = jax.jit(lambda xx, w, b: linear_forward(xx, w, b))

    y = jax.block_until_ready(fwd(x, w_kn, bias_row))

    # Reference check (same semantics as torch.mm(x, W.t()) + bias).
    y_ref = x @ weights.T + bias
    assert y.shape == (batch, size_out)
    assert jnp.allclose(y, y_ref, atol=1e-5, rtol=1e-5), "mismatch vs reference"

    print("KERNEL_OK")
</pallas_src>

<mosaic_0001>
module attributes {stable_mosaic.version = 11 : i64} {
  func.func @_linear_kernel_single_k(%arg0: i32, %arg1: i32, %arg2: i32, %arg3: memref<8x128xf32, #tpu.memory_space<vmem>>, %arg4: memref<128x128xf32, #tpu.memory_space<vmem>>, %arg5: memref<1x128xf32, #tpu.memory_space<vmem>>, %arg6: memref<8x128xf32, #tpu.memory_space<vmem>>) attributes {dimension_semantics = [#tpu.dimension_semantics<parallel>, #tpu.dimension_semantics<parallel>, #tpu.dimension_semantics<arbitrary>], iteration_bounds = array<i64: 1, 1, 1>, scalar_prefetch = 0 : i64, scratch_operands = 0 : i64, tpu.core_type = #tpu.core_type<tc>, window_params = [{transform_indices = @transform_0, window_bounds = array<i64: 8, 128>}, {transform_indices = @transform_1, window_bounds = array<i64: 128, 128>}, {transform_indices = @transform_2, window_bounds = array<i64: 1, 128>}, {transform_indices = @transform_3, window_bounds = array<i64: 8, 128>}]} {
    %c0 = arith.constant 0 : index
    %c0_0 = arith.constant 0 : index
    %0 = vector.load %arg3[%c0, %c0_0] : memref<8x128xf32, #tpu.memory_space<vmem>>, vector<8x128xf32>
    %c0_1 = arith.constant 0 : index
    %c0_2 = arith.constant 0 : index
    %1 = vector.load %arg4[%c0_1, %c0_2] : memref<128x128xf32, #tpu.memory_space<vmem>>, vector<128x128xf32>
    %cst = arith.constant dense<0.000000e+00> : vector<8x128xf32>
    %2 = tpu.matmul %0, %1, %cst {dimension_numbers = #tpu.dot_dimension_numbers<[1], [0], [0], [1], [0, 0, 1, 1], [], []>} : vector<8x128xf32>, vector<128x128xf32>, vector<8x128xf32> -> vector<8x128xf32>
    %c0_3 = arith.constant 0 : index
    %c0_4 = arith.constant 0 : index
    %3 = vector.load %arg5[%c0_3, %c0_4] : memref<1x128xf32, #tpu.memory_space<vmem>>, vector<1x128xf32>
    %4 = vector.broadcast %3 : vector<1x128xf32> to vector<8x128xf32>
    %5 = arith.addf %2, %4 : vector<8x128xf32>
    %c0_5 = arith.constant 0 : index
    %c0_6 = arith.constant 0 : index
    %6 = vector.load %arg6[%c0_5, %c0_6] : memref<8x128xf32, #tpu.memory_space<vmem>>, vector<8x128xf32>
    tpu.vector_store %arg6[%c0_5, %c0_6], %5 {strides = array<i32>} : memref<8x128xf32, #tpu.memory_space<vmem>>, vector<8x128xf32>,
    return
  }
  func.func @transform_0(%arg0: i32, %arg1: i32, %arg2: i32) -> (i32, i32) {
    %c0_i32 = arith.constant 0 : i32
    return %arg0, %arg2 : i32, i32
  }
  func.func @transform_1(%arg0: i32, %arg1: i32, %arg2: i32) -> (i32, i32) {
    %c0_i32 = arith.constant 0 : i32
    return %arg2, %arg1 : i32, i32
  }
  func.func @transform_2(%arg0: i32, %arg1: i32, %arg2: i32) -> (i32, i32) {
    %c0_i32 = arith.constant 0 : i32
    %c0_i32_0 = arith.constant 0 : i32
    return %c0_i32, %arg1 : i32, i32
  }
  func.func @transform_3(%arg0: i32, %arg1: i32, %arg2: i32) -> (i32, i32) {
    %c0_i32 = arith.constant 0 : i32
    return %arg0, %arg1 : i32, i32
  }
}

</mosaic_0001>

<llo_original>
// kernel: _lambda_.1
$region0: #{_lambda_.1}
  #allocation0 [shape = 'u32[]', space=smem, size = 0x4, offset = 0x4, fixed_abs, tag = 'smem constant byte address 0x4 - core index']
  #allocation1 [shape = 'u32[144,128]{1,0:T(1,128)}', space=vmem, size = 0x12000, scoped, tag = 'internal scratch']
  %s0 = inlined_call_operand.vmem [shape: f32[8,128], index: 0, kind: input, shape index: {}]
  %s1 = inlined_call_operand.vmem [shape: f32[128,16], index: 1, kind: input, shape index: {}]
  %s2 = inlined_call_operand.vmem [shape: f32[1,16], index: 2, kind: input, shape index: {}]
  %s3 = inlined_call_operand.hbm [shape: f32[8,16], index: 3, kind: output, shape index: {}]
  %s4 = sld [smem:[#allocation0]]
  $region22: #{_lambda_.1} parent=0
    _
  %s6 = ssub.s32 1, %s4
  %s7 = scalar_select 0, %s6, %s4
  $region1: #{_lambda_.1} parent=0
    #allocation2 [shape = 'u8[4096]{0}', space=vmem, size = 0x1000, scoped, tag = 'output window, operand 0, single buffered']
    #allocation3 [shape = 's32[1]{0}', space=sflag, size = 0x4, scoped, tag = 'scoped memory for _lambda_.1']
    %8 = vsyncpa [#allocation3], 0
    // Predicated region
    $region2: #{_lambda_.1} parent=1 // pred_check
      _
    $region3: #{_lambda_.1} parent=1 // pred_check_branch
      %10 = sbr.rel (0) target = $region5
    $region4: #{_lambda_.1} parent=1 // pred_region
      _
    $region5: #{_lambda_.1} parent=1 // pred_fallthru
      _
    // Predicated region
    $region6: #{_lambda_.1} parent=1 // pred_check
      _
    $region7: #{_lambda_.1} parent=1 // pred_check_branch
      %12 = sbr.rel (0) target = $region9
    $region8: #{_lambda_.1} parent=1 // pred_region
      _
    $region9: #{_lambda_.1} parent=1 // pred_fallthru
      _
    // Predicated region
    $region10: #{_lambda_.1} parent=1 // pred_check
      _
    $region11: #{_lambda_.1} parent=1 // pred_check_branch
      %14 = sbr.rel (0) target = $region13
    $region12: #{_lambda_.1} parent=1 // pred_region
      _
    $region13: #{_lambda_.1} parent=1 // pred_fallthru
      _
    %v15 = vld [vmem:[%s0] sm:$0xff]
    %v16 = vld [vmem:[%s1] sm:$0xff]
    %v17 = vld [vmem:[%s1 + $0x8] sm:$0xff]
    %v18 = vld [vmem:[%s1 + $0x10] sm:$0xff]
    %v19 = vld [vmem:[%s1 + $0x18] sm:$0xff]
    %v20 = vld [vmem:[%s1 + $0x20] sm:$0xff]
    %v21 = vld [vmem:[%s1 + $0x28] sm:$0xff]
    %v22 = vld [vmem:[%s1 + $0x30] sm:$0xff]
    %v23 = vld [vmem:[%s1 + $0x38] sm:$0xff]
    %v24 = vld [vmem:[%s1 + $0x40] sm:$0xff]
    %v25 = vld [vmem:[%s1 + $0x48] sm:$0xff]
    %v26 = vld [vmem:[%s1 + $0x50] sm:$0xff]
    %v27 = vld [vmem:[%s1 + $0x58] sm:$0xff]
    %v28 = vld [vmem:[%s1 + $0x60] sm:$0xff]
    %v29 = vld [vmem:[%s1 + $0x68] sm:$0xff]
    %v30 = vld [vmem:[%s1 + $0x70] sm:$0xff]
    %v31 = vld [vmem:[%s1 + $0x78] sm:$0xff]
    %v32 = vld [vmem:[%s2] sm:$0x1]
    %v34 = vlaneseq
    %v35 = vshrl.u32 %v34, 7
    %v36 = vsub.s32 0, %v35
    %v37 = vrot.slane %v32, %v36
    %39 = vmatprep.subr.mxu0 0.0
    %40 = vmatpush1.msra.mxu0 %v16
    %41 = vmatprep.subr.mxu0 0.0
    %42 = vmatpush1.msra.mxu0 %v17
    %43 = vmatprep.subr.mxu0 0.0
    %44 = vmatpush1.msra.mxu0 %v18
    %45 = vmatprep.subr.mxu0 0.0
    %46 = vmatpush1.msra.mxu0 %v19
    %47 = vmatprep.subr.mxu0 0.0
    %48 = vmatpush1.msra.mxu0 %v20
    %49 = vmatprep.subr.mxu0 0.0
    %50 = vmatpush1.msra.mxu0 %v21
    %51 = vmatprep.subr.mxu0 0.0
    %52 = vmatpush1.msra.mxu0 %v22
    %53 = vmatprep.subr.mxu0 0.0
    %54 = vmatpush1.msra.mxu0 %v23
    %55 = vmatprep.subr.mxu0 0.0
    %56 = vmatpush1.msra.mxu0 %v24
    %57 = vmatprep.subr.mxu0 0.0
    %58 = vmatpush1.msra.mxu0 %v25
    %59 = vmatprep.subr.mxu0 0.0
    %60 = vmatpush1.msra.mxu0 %v26
    %61 = vmatprep.subr.mxu0 0.0
    %62 = vmatpush1.msra.mxu0 %v27
    %63 = vmatprep.subr.mxu0 0.0
    %64 = vmatpush1.msra.mxu0 %v28
    %65 = vmatprep.subr.mxu0 0.0
    %66 = vmatpush1.msra.mxu0 %v29
    %67 = vmatprep.subr.mxu0 0.0
    %68 = vmatpush1.msra.mxu0 %v30
    %69 = vmatprep.subr.mxu0 0.0
    %70 = vmatpush1.msra.mxu0 %v31
    %71 = vmatprep.subr.mxu0 0.0
    %72 = vmatpush1.msra.mxu0 0.0
    %73 = vmatprep.subr.mxu0 0.0
    %74 = vmatpush1.msra.mxu0 0.0
    %75 = vmatprep.subr.mxu0 0.0
    %76 = vmatpush1.msra.mxu0 0.0
    %77 = vmatprep.subr.mxu0 0.0
    %78 = vmatpush1.msra.mxu0 0.0
    %79 = vmatprep.subr.mxu0 0.0
    %80 = vmatpush1.msra.mxu0 0.0
    %81 = vmatprep.subr.mxu0 0.0
    %82 = vmatpush1.msra.mxu0 0.0
    %83 = vmatprep.subr.mxu0 0.0
    %84 = vmatpush1.msra.mxu0 0.0
    %85 = vmatprep.subr.mxu0 0.0
    %86 = vmatpush1.msra.mxu0 0.0
    %87 = vmatprep.subr.mxu0 0.0
    %88 = vmatpush1.msra.mxu0 0.0
    %89 = vmatprep.subr.mxu0 0.0
    %90 = vmatpush1.msra.mxu0 0.0
    %91 = vmatprep.subr.mxu0 0.0
    %92 = vmatpush1.msra.mxu0 0.0
    %93 = vmatprep.subr.mxu0 0.0
    %94 = vmatpush1.msra.mxu0 0.0
    %95 = vmatprep.subr.mxu0 0.0
    %96 = vmatpush1.msra.mxu0 0.0
    %97 = vmatprep.subr.mxu0 0.0
    %98 = vmatpush1.msra.mxu0 0.0
    %99 = vmatprep.subr.mxu0 0.0
    %100 = vmatpush1.msra.mxu0 0.0
    %101 = vmatprep.subr.mxu0 0.0
    %102 = vmatpush1.msra.mxu0 0.0
    %103 = vmatprep.mubr.f32.mxu0 0.0
    %104 = vmatmul.mubr.f32.gmra.mrb[0].mxu0 %v15
    %v105 = vpop.f32.mrb[0].mxu0
    %v106 = vadd.f32 %v37, %v105
    %v107 = vpop.f32.mrb[0].mxu0
    %108 = vdwg.mxu0
    %109 = vst [vmem:[#allocation2] sm:$0xff] %v106
    // Predicated region
    $region14: #{_lambda_.1} parent=1 // pred_check
      _
    $region15: #{_lambda_.1} parent=1 // pred_check_branch
      %111 = sbr.rel (0) target = $region17
    $region16: #{_lambda_.1} parent=1 // pred_region
      %s113 = ssub.s32 128, 128
      %114 = vsyncadd [#allocation3], %s113
      %s116 = sshll.u32 [#allocation2], 4
      %s117 = int_to_ptr.vmem [resolvable:$true] %s116
      %119 = dma.vmem_to_hbm [thread:$0]  %s117, 128, %s3, [#allocation3]
    $region17: #{_lambda_.1} parent=1 // pred_fallthru
      _
    // Predicated region
    $region18: #{_lambda_.1} parent=1 // pred_check
      _
    $region19: #{_lambda_.1} parent=1 // pred_check_branch
      %121 = sbr.rel (0) target = $region21
    $region20: #{_lambda_.1} parent=1 // pred_region
      %122 = dma.done [#allocation3], 128
    $region21: #{_lambda_.1} parent=1 // pred_fallthru
      _
    %123 = vsyncpa [#allocation3], 1

</llo_original>
